<compile_context>
chip_gen: v5e
topology: v5e:2x2
jax: 0.10.0
libtpu: 0.0.40
codegen_flags: <defaults>
</compile_context>

<pallas_src>
import functools

import jax
import jax.numpy as jnp
from jax.experimental import pallas as pl
from jax.experimental.pallas import tpu as pltpu


def _mlp_kernel(s1_ref, s2_ref, t1_ref, emb_ref,
                w1a_ref, w1b_ref, b1_ref, w2_ref, b2_ref, w3_ref, b3_ref,
                out_ref, *, target_weighting, inv_len):
    s1 = s1_ref[...]                       # [bB, L] int32 token ids
    s2 = s2_ref[...]                       # [bB, L] int32 token ids
    tpos = t1_ref[...]                     # [bB, 2] int32 target positions
    bB, L = s1.shape
    V = emb_ref.shape[0]

    vocab_iota = jax.lax.broadcasted_iota(jnp.int32, (bB, V), 1)
    t1c = tpos[:, 0:1]                     # [bB, 1]
    t2c = tpos[:, 1:2]                     # [bB, 1]

    # Fused gather weights: mean-over-seq (1/L per occurrence) + target bump (tw).
    # Pure 2-D VPU compares/adds; L is small and unrolled at trace time.
    wgt1 = jnp.zeros((bB, V), jnp.float32)
    wgt2 = jnp.zeros((bB, V), jnp.float32)
    for l in range(L):
        oh1 = (vocab_iota == s1[:, l:l + 1]).astype(jnp.float32)   # [bB, V]
        oh2 = (vocab_iota == s2[:, l:l + 1]).astype(jnp.float32)
        pw1 = inv_len + target_weighting * (t1c == l).astype(jnp.float32)  # [bB, 1]
        pw2 = inv_len + target_weighting * (t2c == l).astype(jnp.float32)
        wgt1 = wgt1 + pw1 * oh1
        wgt2 = wgt2 + pw2 * oh2

    emb = emb_ref[...].astype(jnp.float32)                          # [V, E]
    comb1 = jnp.dot(wgt1, emb, preferred_element_type=jnp.float32)  # [bB, E]
    comb2 = jnp.dot(wgt2, emb, preferred_element_type=jnp.float32)  # [bB, E]

    # fc1 (w1 pre-split in the wrapper -> no lane-axis concat) -> relu
    h = (jnp.dot(comb1, w1a_ref[...], preferred_element_type=jnp.float32)
         + jnp.dot(comb2, w1b_ref[...], preferred_element_type=jnp.float32)
         + b1_ref[...])
    h = jnp.maximum(h, 0.0)
    # fc2 -> relu  (dropout skipped: inference path)
    h = jnp.dot(h, w2_ref[...], preferred_element_type=jnp.float32) + b2_ref[...]
    h = jnp.maximum(h, 0.0)
    # fc3, padded to 128 output lanes for a lane-dense store
    out = jnp.dot(h, w3_ref[...], preferred_element_type=jnp.float32) + b3_ref[...]
    out_ref[...] = out.astype(out_ref.dtype)


def mlp_forward(s1, s2, t1, emb_matrix, params, target_weighting=0.005,
                block_b=None):
    """Replicates MultilayerPerceptron.forward(s1, s2, t1, training=False)."""
    w1, b1, w2, b2, w3, b3 = params
    B, L = s1.shape
    V, E = emb_matrix.shape
    H = w1.shape[1]
    n_out = w3.shape[1]

    # Split fc1 weight so the kernel never concatenates along the lane axis.
    w1a = w1[:E]
    w1b = w1[E:]

    # Zero-pad the tiny fc3 output to a lane-dense 128-wide slab.
    OUT_PAD = 128
    w3p = jnp.zeros((H, OUT_PAD), w3.dtype).at[:, :n_out].set(w3)
    b3p = jnp.zeros((1, OUT_PAD), b3.dtype).at[:, :n_out].set(b3)

    if block_b is None:
        block_b = B if B <= 128 else 128
    assert B % block_b == 0, "batch must be divisible by the batch block"
    grid = (B // block_b,)

    kernel = functools.partial(_mlp_kernel,
                               target_weighting=float(target_weighting),
                               inv_len=1.0 / float(L))

    def batch_spec(shape):
        nd = len(shape)
        return pl.BlockSpec((block_b,) + tuple(shape[1:]),
                            lambda i: (i,) + (0,) * (nd - 1))

    def const_spec(shape):
        nd = len(shape)
        return pl.BlockSpec(tuple(shape), lambda i: (0,) * nd)

    out = pl.pallas_call(
        kernel,
        out_shape=jax.ShapeDtypeStruct((B, OUT_PAD), jnp.float32),
        grid_spec=pltpu.PrefetchScalarGridSpec(
            num_scalar_prefetch=0,
            grid=grid,
            in_specs=[
                batch_spec(s1.shape),
                batch_spec(s2.shape),
                batch_spec(t1.shape),
                const_spec(emb_matrix.shape),
                const_spec(w1a.shape),
                const_spec(w1b.shape),
                const_spec(b1.shape),
                const_spec(w2.shape),
                const_spec(b2.shape),
                const_spec(w3p.shape),
                const_spec(b3p.shape),
            ],
            out_specs=pl.BlockSpec((block_b, OUT_PAD), lambda i: (i, 0)),
        ),
        compiler_params=pltpu.CompilerParams(
            dimension_semantics=("parallel",)),
    )(s1, s2, t1, emb_matrix, w1a, w1b, b1, w2, b2, w3p, b3p)
    return out[:, :n_out]


def init_params(key, embedding_dimension, hidden_size):
    """Deterministic parameter init matching nn.Linear shapes (stored transposed)."""
    k1, k2, k3, k4, k5, k6 = jax.random.split(key, 6)
    in1 = embedding_dimension * 2

    def uniform(k, shape, bound):
        return jax.random.uniform(k, shape, jnp.float32, -bound, bound)

    w1 = uniform(k1, (in1, hidden_size), 1.0 / jnp.sqrt(in1))
    b1 = uniform(k2, (1, hidden_size), 1.0 / jnp.sqrt(in1))
    w2 = uniform(k3, (hidden_size, hidden_size), 1.0 / jnp.sqrt(hidden_size))
    b2 = uniform(k4, (1, hidden_size), 1.0 / jnp.sqrt(hidden_size))
    w3 = uniform(k5, (hidden_size, 2), 1.0 / jnp.sqrt(hidden_size))
    b3 = uniform(k6, (1, 2), 1.0 / jnp.sqrt(hidden_size))
    return (w1, b1, w2, b2, w3, b3)


if __name__ == "__main__":
    # small, deterministic setup
    vocab_size = 64
    embedding_dimension = 32
    hidden_size = 32
    B, L = 8, 8

    root = jax.random.PRNGKey(0)
    k_emb, k_par, k_s1, k_s2, k_t = jax.random.split(root, 5)

    # pretrained embedding matrix; row 0 zeroed (padding_idx=0 convention)
    emb_matrix = jax.random.normal(k_emb, (vocab_size, embedding_dimension), jnp.float32)
    emb_matrix = emb_matrix.at[0].set(0.0)

    params = init_params(k_par, embedding_dimension, hidden_size)

    s1 = jax.random.randint(k_s1, (B, L), 0, vocab_size, dtype=jnp.int32)
    s2 = jax.random.randint(k_s2, (B, L), 0, vocab_size, dtype=jnp.int32)
    t1 = jax.random.randint(k_t, (B, 2), 0, L, dtype=jnp.int32)  # target positions in [0, L)

    out = mlp_forward(s1, s2, t1, emb_matrix, params, target_weighting=0.005)
    out = jax.block_until_ready(out)

    # sanity check against a pure-JAX reference of the same math (f32, highest precision)
    w1, b1, w2, b2, w3, b3 = params
    hp = jax.lax.Precision.HIGHEST
    e1 = emb_matrix[s1]
    e2 = emb_matrix[s2]
    t1e = e1[jnp.arange(B), t1[:, 0]]
    t2e = e2[jnp.arange(B), t1[:, 1]]
    x = jnp.concatenate([e1.mean(1) + 0.005 * t1e, e2.mean(1) + 0.005 * t2e], axis=-1)
    ref = jnp.maximum(jnp.dot(x, w1, precision=hp) + b1, 0.0)
    ref = jnp.maximum(jnp.dot(ref, w2, precision=hp) + b2, 0.0)
    ref = jnp.dot(ref, w3, precision=hp) + b3

    assert out.shape == (B, 2)
    assert jnp.allclose(out, ref, atol=1e-4, rtol=1e-4)
    print("KERNEL_OK")
</pallas_src>

<mosaic_0001>
module attributes {stable_mosaic.version = 11 : i64} {
  func.func @_mlp_kernel(%arg0: i32, %arg1: memref<8x8xi32, #tpu.memory_space<vmem>>, %arg2: memref<8x8xi32, #tpu.memory_space<vmem>>, %arg3: memref<8x2xi32, #tpu.memory_space<vmem>>, %arg4: memref<64x32xf32, #tpu.memory_space<vmem>>, %arg5: memref<32x32xf32, #tpu.memory_space<vmem>>, %arg6: memref<32x32xf32, #tpu.memory_space<vmem>>, %arg7: memref<1x32xf32, #tpu.memory_space<vmem>>, %arg8: memref<32x32xf32, #tpu.memory_space<vmem>>, %arg9: memref<1x32xf32, #tpu.memory_space<vmem>>, %arg10: memref<32x128xf32, #tpu.memory_space<vmem>>, %arg11: memref<1x128xf32, #tpu.memory_space<vmem>>, %arg12: memref<8x128xf32, #tpu.memory_space<vmem>>) attributes {dimension_semantics = [#tpu.dimension_semantics<parallel>], iteration_bounds = array<i64: 1>, scalar_prefetch = 0 : i64, scratch_operands = 0 : i64, tpu.core_type = #tpu.core_type<tc>, window_params = [{transform_indices = @transform_0, window_bounds = array<i64: 8, 8>}, {transform_indices = @transform_1, window_bounds = array<i64: 8, 8>}, {transform_indices = @transform_2, window_bounds = array<i64: 8, 2>}, {pipeline_mode = #tpu.pipeline_mode<synchronous>, transform_indices = @transform_3, window_bounds = array<i64: 64, 32>}, {pipeline_mode = #tpu.pipeline_mode<synchronous>, transform_indices = @transform_4, window_bounds = array<i64: 32, 32>}, {pipeline_mode = #tpu.pipeline_mode<synchronous>, transform_indices = @transform_5, window_bounds = array<i64: 32, 32>}, {pipeline_mode = #tpu.pipeline_mode<synchronous>, transform_indices = @transform_6, window_bounds = array<i64: 1, 32>}, {pipeline_mode = #tpu.pipeline_mode<synchronous>, transform_indices = @transform_7, window_bounds = array<i64: 32, 32>}, {pipeline_mode = #tpu.pipeline_mode<synchronous>, transform_indices = @transform_8, window_bounds = array<i64: 1, 32>}, {pipeline_mode = #tpu.pipeline_mode<synchronous>, transform_indices = @transform_9, window_bounds = array<i64: 32, 128>}, {pipeline_mode = #tpu.pipeline_mode<synchronous>, transform_indices = @transform_10, window_bounds = array<i64: 1, 128>}, {transform_indices = @transform_11, window_bounds = array<i64: 8, 128>}]} {
    %c0 = arith.constant 0 : index
    %c0_0 = arith.constant 0 : index
    %0 = vector.load %arg1[%c0, %c0_0] : memref<8x8xi32, #tpu.memory_space<vmem>>, vector<8x8xi32>
    %c0_1 = arith.constant 0 : index
    %c0_2 = arith.constant 0 : index
    %1 = vector.load %arg2[%c0_1, %c0_2] : memref<8x8xi32, #tpu.memory_space<vmem>>, vector<8x8xi32>
    %c0_3 = arith.constant 0 : index
    %c0_4 = arith.constant 0 : index
    %2 = vector.load %arg3[%c0_3, %c0_4] : memref<8x2xi32, #tpu.memory_space<vmem>>, vector<8x2xi32>
    %3 = tpu.iota {dimensions = array<i32: 1>} : vector<8x64xi32>
    %4 = vector.extract_strided_slice %2 {offsets = [0, 0], sizes = [8, 1], strides = [1, 1]} : vector<8x2xi32> to vector<8x1xi32>
    %5 = vector.extract_strided_slice %2 {offsets = [0, 1], sizes = [8, 1], strides = [1, 1]} : vector<8x2xi32> to vector<8x1xi32>
    %cst = arith.constant 0.000000e+00 : f32
    %6 = vector.broadcast %cst : f32 to vector<8x64xf32>
    %cst_5 = arith.constant 0.000000e+00 : f32
    %7 = vector.broadcast %cst_5 : f32 to vector<8x64xf32>
    %8 = vector.extract_strided_slice %0 {offsets = [0, 0], sizes = [8, 1], strides = [1, 1]} : vector<8x8xi32> to vector<8x1xi32>
    %9 = vector.broadcast %8 : vector<8x1xi32> to vector<8x64xi32>
    %10 = arith.cmpi eq, %3, %9 : vector<8x64xi32>
    %11 = arith.extui %10 : vector<8x64xi1> to vector<8x64xi32>
    %12 = arith.sitofp %11 : vector<8x64xi32> to vector<8x64xf32>
    %13 = vector.extract_strided_slice %1 {offsets = [0, 0], sizes = [8, 1], strides = [1, 1]} : vector<8x8xi32> to vector<8x1xi32>
    %14 = vector.broadcast %13 : vector<8x1xi32> to vector<8x64xi32>
    %15 = arith.cmpi eq, %3, %14 : vector<8x64xi32>
    %16 = arith.extui %15 : vector<8x64xi1> to vector<8x64xi32>
    %17 = arith.sitofp %16 : vector<8x64xi32> to vector<8x64xf32>
    %c0_i32 = arith.constant 0 : i32
    %18 = vector.broadcast %c0_i32 : i32 to vector<8x1xi32>
    %19 = arith.cmpi eq, %4, %18 : vector<8x1xi32>
    %20 = arith.extui %19 : vector<8x1xi1> to vector<8x1xi32>
    %21 = arith.sitofp %20 : vector<8x1xi32> to vector<8x1xf32>
    %cst_6 = arith.constant 5.000000e-03 : f32
    %22 = vector.broadcast %cst_6 : f32 to vector<8x1xf32>
    %23 = arith.mulf %22, %21 : vector<8x1xf32>
    %cst_7 = arith.constant 1.250000e-01 : f32
    %24 = vector.broadcast %cst_7 : f32 to vector<8x1xf32>
    %25 = arith.addf %24, %23 : vector<8x1xf32>
    %c0_i32_8 = arith.constant 0 : i32
    %26 = vector.broadcast %c0_i32_8 : i32 to vector<8x1xi32>
    %27 = arith.cmpi eq, %5, %26 : vector<8x1xi32>
    %28 = arith.extui %27 : vector<8x1xi1> to vector<8x1xi32>
    %29 = arith.sitofp %28 : vector<8x1xi32> to vector<8x1xf32>
    %cst_9 = arith.constant 5.000000e-03 : f32
    %30 = vector.broadcast %cst_9 : f32 to vector<8x1xf32>
    %31 = arith.mulf %30, %29 : vector<8x1xf32>
    %cst_10 = arith.constant 1.250000e-01 : f32
    %32 = vector.broadcast %cst_10 : f32 to vector<8x1xf32>
    %33 = arith.addf %32, %31 : vector<8x1xf32>
    %34 = vector.broadcast %25 : vector<8x1xf32> to vector<8x64xf32>
    %35 = arith.mulf %34, %12 : vector<8x64xf32>
    %36 = arith.addf %6, %35 : vector<8x64xf32>
    %37 = vector.broadcast %33 : vector<8x1xf32> to vector<8x64xf32>
    %38 = arith.mulf %37, %17 : vector<8x64xf32>
    %39 = arith.addf %7, %38 : vector<8x64xf32>
    %40 = vector.extract_strided_slice %0 {offsets = [0, 1], sizes = [8, 1], strides = [1, 1]} : vector<8x8xi32> to vector<8x1xi32>
    %41 = vector.broadcast %40 : vector<8x1xi32> to vector<8x64xi32>
    %42 = arith.cmpi eq, %3, %41 : vector<8x64xi32>
    %43 = arith.extui %42 : vector<8x64xi1> to vector<8x64xi32>
    %44 = arith.sitofp %43 : vector<8x64xi32> to vector<8x64xf32>
    %45 = vector.extract_strided_slice %1 {offsets = [0, 1], sizes = [8, 1], strides = [1, 1]} : vector<8x8xi32> to vector<8x1xi32>
    %46 = vector.broadcast %45 : vector<8x1xi32> to vector<8x64xi32>
    %47 = arith.cmpi eq, %3, %46 : vector<8x64xi32>
    %48 = arith.extui %47 : vector<8x64xi1> to vector<8x64xi32>
    %49 = arith.sitofp %48 : vector<8x64xi32> to vector<8x64xf32>
    %c1_i32 = arith.constant 1 : i32
    %50 = vector.broadcast %c1_i32 : i32 to vector<8x1xi32>
    %51 = arith.cmpi eq, %4, %50 : vector<8x1xi32>
    %52 = arith.extui %51 : vector<8x1xi1> to vector<8x1xi32>
    %53 = arith.sitofp %52 : vector<8x1xi32> to vector<8x1xf32>
    %cst_11 = arith.constant 5.000000e-03 : f32
    %54 = vector.broadcast %cst_11 : f32 to vector<8x1xf32>
    %55 = arith.mulf %54, %53 : vector<8x1xf32>
    %cst_12 = arith.constant 1.250000e-01 : f32
    %56 = vector.broadcast %cst_12 : f32 to vector<8x1xf32>
    %57 = arith.addf %56, %55 : vector<8x1xf32>
    %c1_i32_13 = arith.constant 1 : i32
    %58 = vector.broadcast %c1_i32_13 : i32 to vector<8x1xi32>
    %59 = arith.cmpi eq, %5, %58 : vector<8x1xi32>
    %60 = arith.extui %59 : vector<8x1xi1> to vector<8x1xi32>
    %61 = arith.sitofp %60 : vector<8x1xi32> to vector<8x1xf32>
    %cst_14 = arith.constant 5.000000e-03 : f32
    %62 = vector.broadcast %cst_14 : f32 to vector<8x1xf32>
    %63 = arith.mulf %62, %61 : vector<8x1xf32>
    %cst_15 = arith.constant 1.250000e-01 : f32
    %64 = vector.broadcast %cst_15 : f32 to vector<8x1xf32>
    %65 = arith.addf %64, %63 : vector<8x1xf32>
    %66 = vector.broadcast %57 : vector<8x1xf32> to vector<8x64xf32>
    %67 = arith.mulf %66, %44 : vector<8x64xf32>
    %68 = arith.addf %36, %67 : vector<8x64xf32>
    %69 = vector.broadcast %65 : vector<8x1xf32> to vector<8x64xf32>
    %70 = arith.mulf %69, %49 : vector<8x64xf32>
    %71 = arith.addf %39, %70 : vector<8x64xf32>
    %72 = vector.extract_strided_slice %0 {offsets = [0, 2], sizes = [8, 1], strides = [1, 1]} : vector<8x8xi32> to vector<8x1xi32>
    %73 = vector.broadcast %72 : vector<8x1xi32> to vector<8x64xi32>
    %74 = arith.cmpi eq, %3, %73 : vector<8x64xi32>
    %75 = arith.extui %74 : vector<8x64xi1> to vector<8x64xi32>
    %76 = arith.sitofp %75 : vector<8x64xi32> to vector<8x64xf32>
    %77 = vector.extract_strided_slice %1 {offsets = [0, 2], sizes = [8, 1], strides = [1, 1]} : vector<8x8xi32> to vector<8x1xi32>
    %78 = vector.broadcast %77 : vector<8x1xi32> to vector<8x64xi32>
    %79 = arith.cmpi eq, %3, %78 : vector<8x64xi32>
    %80 = arith.extui %79 : vector<8x64xi1> to vector<8x64xi32>
    %81 = arith.sitofp %80 : vector<8x64xi32> to vector<8x64xf32>
    %c2_i32 = arith.constant 2 : i32
    %82 = vector.broadcast %c2_i32 : i32 to vector<8x1xi32>
    %83 = arith.cmpi eq, %4, %82 : vector<8x1xi32>
    %84 = arith.extui %83 : vector<8x1xi1> to vector<8x1xi32>
    %85 = arith.sitofp %84 : vector<8x1xi32> to vector<8x1xf32>
    %cst_16 = arith.constant 5.000000e-03 : f32
    %86 = vector.broadcast %cst_16 : f32 to vector<8x1xf32>
    %87 = arith.mulf %86, %85 : vector<8x1xf32>
    %cst_17 = arith.constant 1.250000e-01 : f32
    %88 = vector.broadcast %cst_17 : f32 to vector<8x1xf32>
    %89 = arith.addf %88, %87 : vector<8x1xf32>
    %c2_i32_18 = arith.constant 2 : i32
    %90 = vector.broadcast %c2_i32_18 : i32 to vector<8x1xi32>
    %91 = arith.cmpi eq, %5, %90 : vector<8x1xi32>
    %92 = arith.extui %91 : vector<8x1xi1> to vector<8x1xi32>
    %93 = arith.sitofp %92 : vector<8x1xi32> to vector<8x1xf32>
    %cst_19 = arith.constant 5.000000e-03 : f32
    %94 = vector.broadcast %cst_19 : f32 to vector<8x1xf32>
    %95 = arith.mulf %94, %93 : vector<8x1xf32>
    %cst_20 = arith.constant 1.250000e-01 : f32
    %96 = vector.broadcast %cst_20 : f32 to vector<8x1xf32>
    %97 = arith.addf %96, %95 : vector<8x1xf32>
    %98 = vector.broadcast %89 : vector<8x1xf32> to vector<8x64xf32>
    %99 = arith.mulf %98, %76 : vector<8x64xf32>
    %100 = arith.addf %68, %99 : vector<8x64xf32>
    %101 = vector.broadcast %97 : vector<8x1xf32> to vector<8x64xf32>
    %102 = arith.mulf %101, %81 : vector<8x64xf32>
    %103 = arith.addf %71, %102 : vector<8x64xf32>
    %104 = vector.extract_strided_slice %0 {offsets = [0, 3], sizes = [8, 1], strides = [1, 1]} : vector<8x8xi32> to vector<8x1xi32>
    %105 = vector.broadcast %104 : vector<8x1xi32> to vector<8x64xi32>
    %106 = arith.cmpi eq, %3, %105 : vector<8x64xi32>
    %107 = arith.extui %106 : vector<8x64xi1> to vector<8x64xi32>
    %108 = arith.sitofp %107 : vector<8x64xi32> to vector<8x64xf32>
    %109 = vector.extract_strided_slice %1 {offsets = [0, 3], sizes = [8, 1], strides = [1, 1]} : vector<8x8xi32> to vector<8x1xi32>
    %110 = vector.broadcast %109 : vector<8x1xi32> to vector<8x64xi32>
    %111 = arith.cmpi eq, %3, %110 : vector<8x64xi32>
    %112 = arith.extui %111 : vector<8x64xi1> to vector<8x64xi32>
    %113 = arith.sitofp %112 : vector<8x64xi32> to vector<8x64xf32>
    %c3_i32 = arith.constant 3 : i32
    %114 = vector.broadcast %c3_i32 : i32 to vector<8x1xi32>
    %115 = arith.cmpi eq, %4, %114 : vector<8x1xi32>
    %116 = arith.extui %115 : vector<8x1xi1> to vector<8x1xi32>
    %117 = arith.sitofp %116 : vector<8x1xi32> to vector<8x1xf32>
    %cst_21 = arith.constant 5.000000e-03 : f32
    %118 = vector.broadcast %cst_21 : f32 to vector<8x1xf32>
    %119 = arith.mulf %118, %117 : vector<8x1xf32>
    %cst_22 = arith.constant 1.250000e-01 : f32
    %120 = vector.broadcast %cst_22 : f32 to vector<8x1xf32>
    %121 = arith.addf %120, %119 : vector<8x1xf32>
    %c3_i32_23 = arith.constant 3 : i32
    %122 = vector.broadcast %c3_i32_23 : i32 to vector<8x1xi32>
    %123 = arith.cmpi eq, %5, %122 : vector<8x1xi32>
    %124 = arith.extui %123 : vector<8x1xi1> to vector<8x1xi32>
    %125 = arith.sitofp %124 : vector<8x1xi32> to vector<8x1xf32>
    %cst_24 = arith.constant 5.000000e-03 : f32
    %126 = vector.broadcast %cst_24 : f32 to vector<8x1xf32>
    %127 = arith.mulf %126, %125 : vector<8x1xf32>
    %cst_25 = arith.constant 1.250000e-01 : f32
    %128 = vector.broadcast %cst_25 : f32 to vector<8x1xf32>
    %129 = arith.addf %128, %127 : vector<8x1xf32>
    %130 = vector.broadcast %121 : vector<8x1xf32> to vector<8x64xf32>
    %131 = arith.mulf %130, %108 : vector<8x64xf32>
    %132 = arith.addf %100, %131 : vector<8x64xf32>
    %133 = vector.broadcast %129 : vector<8x1xf32> to vector<8x64xf32>
    %134 = arith.mulf %133, %113 : vector<8x64xf32>
    %135 = arith.addf %103, %134 : vector<8x64xf32>
    %136 = vector.extract_strided_slice %0 {offsets = [0, 4], sizes = [8, 1], strides = [1, 1]} : vector<8x8xi32> to vector<8x1xi32>
    %137 = vector.broadcast %136 : vector<8x1xi32> to vector<8x64xi32>
    %138 = arith.cmpi eq, %3, %137 : vector<8x64xi32>
    %139 = arith.extui %138 : vector<8x64xi1> to vector<8x64xi32>
    %140 = arith.sitofp %139 : vector<8x64xi32> to vector<8x64xf32>
    %141 = vector.extract_strided_slice %1 {offsets = [0, 4], sizes = [8, 1], strides = [1, 1]} : vector<8x8xi32> to vector<8x1xi32>
    %142 = vector.broadcast %141 : vector<8x1xi32> to vector<8x64xi32>
    %143 = arith.cmpi eq, %3, %142 : vector<8x64xi32>
    %144 = arith.extui %143 : vector<8x64xi1> to vector<8x64xi32>
    %145 = arith.sitofp %144 : vector<8x64xi32> to vector<8x64xf32>
    %c4_i32 = arith.constant 4 : i32
    %146 = vector.broadcast %c4_i32 : i32 to vector<8x1xi32>
    %147 = arith.cmpi eq, %4, %146 : vector<8x1xi32>
    %148 = arith.extui %147 : vector<8x1xi1> to vector<8x1xi32>
    %149 = arith.sitofp %148 : vector<8x1xi32> to vector<8x1xf32>
    %cst_26 = arith.constant 5.000000e-03 : f32
    %150 = vector.broadcast %cst_26 : f32 to vector<8x1xf32>
    %151 = arith.mulf %150, %149 : vector<8x1xf32>
    %cst_27 = arith.constant 1.250000e-01 : f32
    %152 = vector.broadcast %cst_27 : f32 to vector<8x1xf32>
    %153 = arith.addf %152, %151 : vector<8x1xf32>
    %c4_i32_28 = arith.constant 4 : i32
    %154 = vector.broadcast %c4_i32_28 : i32 to vector<8x1xi32>
    %155 = arith.cmpi eq, %5, %154 : vector<8x1xi32>
    %156 = arith.extui %155 : vector<8x1xi1> to vector<8x1xi32>
    %157 = arith.sitofp %156 : vector<8x1xi32> to vector<8x1xf32>
    %cst_29 = arith.constant 5.000000e-03 : f32
    %158 = vector.broadcast %cst_29 : f32 to vector<8x1xf32>
    %159 = arith.mulf %158, %157 : vector<8x1xf32>
    %cst_30 = arith.constant 1.250000e-01 : f32
    %160 = vector.broadcast %cst_30 : f32 to vector<8x1xf32>
    %161 = arith.addf %160, %159 : vector<8x1xf32>
    %162 = vector.broadcast %153 : vector<8x1xf32> to vector<8x64xf32>
    %163 = arith.mulf %162, %140 : vector<8x64xf32>
    %164 = arith.addf %132, %163 : vector<8x64xf32>
    %165 = vector.broadcast %161 : vector<8x1xf32> to vector<8x64xf32>
    %166 = arith.mulf %165, %145 : vector<8x64xf32>
    %167 = arith.addf %135, %166 : vector<8x64xf32>
    %168 = vector.extract_strided_slice %0 {offsets = [0, 5], sizes = [8, 1], strides = [1, 1]} : vector<8x8xi32> to vector<8x1xi32>
    %169 = vector.broadcast %168 : vector<8x1xi32> to vector<8x64xi32>
    %170 = arith.cmpi eq, %3, %169 : vector<8x64xi32>
    %171 = arith.extui %170 : vector<8x64xi1> to vector<8x64xi32>
    %172 = arith.sitofp %171 : vector<8x64xi32> to vector<8x64xf32>
    %173 = vector.extract_strided_slice %1 {offsets = [0, 5], sizes = [8, 1], strides = [1, 1]} : vector<8x8xi32> to vector<8x1xi32>
    %174 = vector.broadcast %173 : vector<8x1xi32> to vector<8x64xi32>
    %175 = arith.cmpi eq, %3, %174 : vector<8x64xi32>
    %176 = arith.extui %175 : vector<8x64xi1> to vector<8x64xi32>
    %177 = arith.sitofp %176 : vector<8x64xi32> to vector<8x64xf32>
    %c5_i32 = arith.constant 5 : i32
    %178 = vector.broadcast %c5_i32 : i32 to vector<8x1xi32>
    %179 = arith.cmpi eq, %4, %178 : vector<8x1xi32>
    %180 = arith.extui %179 : vector<8x1xi1> to vector<8x1xi32>
    %181 = arith.sitofp %180 : vector<8x1xi32> to vector<8x1xf32>
    %cst_31 = arith.constant 5.000000e-03 : f32
    %182 = vector.broadcast %cst_31 : f32 to vector<8x1xf32>
    %183 = arith.mulf %182, %181 : vector<8x1xf32>
    %cst_32 = arith.constant 1.250000e-01 : f32
    %184 = vector.broadcast %cst_32 : f32 to vector<8x1xf32>
    %185 = arith.addf %184, %183 : vector<8x1xf32>
    %c5_i32_33 = arith.constant 5 : i32
    %186 = vector.broadcast %c5_i32_33 : i32 to vector<8x1xi32>
    %187 = arith.cmpi eq, %5, %186 : vector<8x1xi32>
    %188 = arith.extui %187 : vector<8x1xi1> to vector<8x1xi32>
    %189 = arith.sitofp %188 : vector<8x1xi32> to vector<8x1xf32>
    %cst_34 = arith.constant 5.000000e-03 : f32
    %190 = vector.broadcast %cst_34 : f32 to vector<8x1xf32>
    %191 = arith.mulf %190, %189 : vector<8x1xf32>
    %cst_35 = arith.constant 1.250000e-01 : f32
    %192 = vector.broadcast %cst_35 : f32 to vector<8x1xf32>
    %193 = arith.addf %192, %191 : vector<8x1xf32>
    %194 = vector.broadcast %185 : vector<8x1xf32> to vector<8x64xf32>
    %195 = arith.mulf %194, %172 : vector<8x64xf32>
    %196 = arith.addf %164, %195 : vector<8x64xf32>
    %197 = vector.broadcast %193 : vector<8x1xf32> to vector<8x64xf32>
    %198 = arith.mulf %197, %177 : vector<8x64xf32>
    %199 = arith.addf %167, %198 : vector<8x64xf32>
    %200 = vector.extract_strided_slice %0 {offsets = [0, 6], sizes = [8, 1], strides = [1, 1]} : vector<8x8xi32> to vector<8x1xi32>
    %201 = vector.broadcast %200 : vector<8x1xi32> to vector<8x64xi32>
    %202 = arith.cmpi eq, %3, %201 : vector<8x64xi32>
    %203 = arith.extui %202 : vector<8x64xi1> to vector<8x64xi32>
    %204 = arith.sitofp %203 : vector<8x64xi32> to vector<8x64xf32>
    %205 = vector.extract_strided_slice %1 {offsets = [0, 6], sizes = [8, 1], strides = [1, 1]} : vector<8x8xi32> to vector<8x1xi32>
    %206 = vector.broadcast %205 : vector<8x1xi32> to vector<8x64xi32>
    %207 = arith.cmpi eq, %3, %206 : vector<8x64xi32>
    %208 = arith.extui %207 : vector<8x64xi1> to vector<8x64xi32>
    %209 = arith.sitofp %208 : vector<8x64xi32> to vector<8x64xf32>
    %c6_i32 = arith.constant 6 : i32
    %210 = vector.broadcast %c6_i32 : i32 to vector<8x1xi32>
    %211 = arith.cmpi eq, %4, %210 : vector<8x1xi32>
    %212 = arith.extui %211 : vector<8x1xi1> to vector<8x1xi32>
    %213 = arith.sitofp %212 : vector<8x1xi32> to vector<8x1xf32>
    %cst_36 = arith.constant 5.000000e-03 : f32
    %214 = vector.broadcast %cst_36 : f32 to vector<8x1xf32>
    %215 = arith.mulf %214, %213 : vector<8x1xf32>
    %cst_37 = arith.constant 1.250000e-01 : f32
    %216 = vector.broadcast %cst_37 : f32 to vector<8x1xf32>
    %217 = arith.addf %216, %215 : vector<8x1xf32>
    %c6_i32_38 = arith.constant 6 : i32
    %218 = vector.broadcast %c6_i32_38 : i32 to vector<8x1xi32>
    %219 = arith.cmpi eq, %5, %218 : vector<8x1xi32>
    %220 = arith.extui %219 : vector<8x1xi1> to vector<8x1xi32>
    %221 = arith.sitofp %220 : vector<8x1xi32> to vector<8x1xf32>
    %cst_39 = arith.constant 5.000000e-03 : f32
    %222 = vector.broadcast %cst_39 : f32 to vector<8x1xf32>
    %223 = arith.mulf %222, %221 : vector<8x1xf32>
    %cst_40 = arith.constant 1.250000e-01 : f32
    %224 = vector.broadcast %cst_40 : f32 to vector<8x1xf32>
    %225 = arith.addf %224, %223 : vector<8x1xf32>
    %226 = vector.broadcast %217 : vector<8x1xf32> to vector<8x64xf32>
    %227 = arith.mulf %226, %204 : vector<8x64xf32>
    %228 = arith.addf %196, %227 : vector<8x64xf32>
    %229 = vector.broadcast %225 : vector<8x1xf32> to vector<8x64xf32>
    %230 = arith.mulf %229, %209 : vector<8x64xf32>
    %231 = arith.addf %199, %230 : vector<8x64xf32>
    %232 = vector.extract_strided_slice %0 {offsets = [0, 7], sizes = [8, 1], strides = [1, 1]} : vector<8x8xi32> to vector<8x1xi32>
    %233 = vector.broadcast %232 : vector<8x1xi32> to vector<8x64xi32>
    %234 = arith.cmpi eq, %3, %233 : vector<8x64xi32>
    %235 = arith.extui %234 : vector<8x64xi1> to vector<8x64xi32>
    %236 = arith.sitofp %235 : vector<8x64xi32> to vector<8x64xf32>
    %237 = vector.extract_strided_slice %1 {offsets = [0, 7], sizes = [8, 1], strides = [1, 1]} : vector<8x8xi32> to vector<8x1xi32>
    %238 = vector.broadcast %237 : vector<8x1xi32> to vector<8x64xi32>
    %239 = arith.cmpi eq, %3, %238 : vector<8x64xi32>
    %240 = arith.extui %239 : vector<8x64xi1> to vector<8x64xi32>
    %241 = arith.sitofp %240 : vector<8x64xi32> to vector<8x64xf32>
    %c7_i32 = arith.constant 7 : i32
    %242 = vector.broadcast %c7_i32 : i32 to vector<8x1xi32>
    %243 = arith.cmpi eq, %4, %242 : vector<8x1xi32>
    %244 = arith.extui %243 : vector<8x1xi1> to vector<8x1xi32>
    %245 = arith.sitofp %244 : vector<8x1xi32> to vector<8x1xf32>
    %cst_41 = arith.constant 5.000000e-03 : f32
    %246 = vector.broadcast %cst_41 : f32 to vector<8x1xf32>
    %247 = arith.mulf %246, %245 : vector<8x1xf32>
    %cst_42 = arith.constant 1.250000e-01 : f32
    %248 = vector.broadcast %cst_42 : f32 to vector<8x1xf32>
    %249 = arith.addf %248, %247 : vector<8x1xf32>
    %c7_i32_43 = arith.constant 7 : i32
    %250 = vector.broadcast %c7_i32_43 : i32 to vector<8x1xi32>
    %251 = arith.cmpi eq, %5, %250 : vector<8x1xi32>
    %252 = arith.extui %251 : vector<8x1xi1> to vector<8x1xi32>
    %253 = arith.sitofp %252 : vector<8x1xi32> to vector<8x1xf32>
    %cst_44 = arith.constant 5.000000e-03 : f32
    %254 = vector.broadcast %cst_44 : f32 to vector<8x1xf32>
    %255 = arith.mulf %254, %253 : vector<8x1xf32>
    %cst_45 = arith.constant 1.250000e-01 : f32
    %256 = vector.broadcast %cst_45 : f32 to vector<8x1xf32>
    %257 = arith.addf %256, %255 : vector<8x1xf32>
    %258 = vector.broadcast %249 : vector<8x1xf32> to vector<8x64xf32>
    %259 = arith.mulf %258, %236 : vector<8x64xf32>
    %260 = arith.addf %228, %259 : vector<8x64xf32>
    %261 = vector.broadcast %257 : vector<8x1xf32> to vector<8x64xf32>
    %262 = arith.mulf %261, %241 : vector<8x64xf32>
    %263 = arith.addf %231, %262 : vector<8x64xf32>
    %c0_46 = arith.constant 0 : index
    %c0_47 = arith.constant 0 : index
    %264 = vector.load %arg4[%c0_46, %c0_47] : memref<64x32xf32, #tpu.memory_space<vmem>>, vector<64x32xf32>
    %cst_48 = arith.constant dense<0.000000e+00> : vector<8x32xf32>
    %265 = tpu.matmul %260, %264, %cst_48 {dimension_numbers = #tpu.dot_dimension_numbers<[1], [0], [0], [1], [0, 0, 1, 1], [], []>} : vector<8x64xf32>, vector<64x32xf32>, vector<8x32xf32> -> vector<8x32xf32>
    %cst_49 = arith.constant dense<0.000000e+00> : vector<8x32xf32>
    %266 = tpu.matmul %263, %264, %cst_49 {dimension_numbers = #tpu.dot_dimension_numbers<[1], [0], [0], [1], [0, 0, 1, 1], [], []>} : vector<8x64xf32>, vector<64x32xf32>, vector<8x32xf32> -> vector<8x32xf32>
    %c0_50 = arith.constant 0 : index
    %c0_51 = arith.constant 0 : index
    %267 = vector.load %arg5[%c0_50, %c0_51] : memref<32x32xf32, #tpu.memory_space<vmem>>, vector<32x32xf32>
    %cst_52 = arith.constant dense<0.000000e+00> : vector<8x32xf32>
    %268 = tpu.matmul %265, %267, %cst_52 {dimension_numbers = #tpu.dot_dimension_numbers<[1], [0], [0], [1], [0, 0, 1, 1], [], []>} : vector<8x32xf32>, vector<32x32xf32>, vector<8x32xf32> -> vector<8x32xf32>
    %c0_53 = arith.constant 0 : index
    %c0_54 = arith.constant 0 : index
    %269 = vector.load %arg6[%c0_53, %c0_54] : memref<32x32xf32, #tpu.memory_space<vmem>>, vector<32x32xf32>
    %cst_55 = arith.constant dense<0.000000e+00> : vector<8x32xf32>
    %270 = tpu.matmul %266, %269, %cst_55 {dimension_numbers = #tpu.dot_dimension_numbers<[1], [0], [0], [1], [0, 0, 1, 1], [], []>} : vector<8x32xf32>, vector<32x32xf32>, vector<8x32xf32> -> vector<8x32xf32>
    %271 = arith.addf %268, %270 : vector<8x32xf32>
    %c0_56 = arith.constant 0 : index
    %c0_57 = arith.constant 0 : index
    %272 = vector.load %arg7[%c0_56, %c0_57] : memref<1x32xf32, #tpu.memory_space<vmem>>, vector<1x32xf32>
    %273 = vector.broadcast %272 : vector<1x32xf32> to vector<8x32xf32>
    %274 = arith.addf %271, %273 : vector<8x32xf32>
    %cst_58 = arith.constant 0.000000e+00 : f32
    %275 = vector.broadcast %cst_58 : f32 to vector<8x32xf32>
    %276 = arith.maximumf %274, %275 : vector<8x32xf32>
    %c0_59 = arith.constant 0 : index
    %c0_60 = arith.constant 0 : index
    %277 = vector.load %arg8[%c0_59, %c0_60] : memref<32x32xf32, #tpu.memory_space<vmem>>, vector<32x32xf32>
    %cst_61 = arith.constant dense<0.000000e+00> : vector<8x32xf32>
    %278 = tpu.matmul %276, %277, %cst_61 {dimension_numbers = #tpu.dot_dimension_numbers<[1], [0], [0], [1], [0, 0, 1, 1], [], []>} : vector<8x32xf32>, vector<32x32xf32>, vector<8x32xf32> -> vector<8x32xf32>
    %c0_62 = arith.constant 0 : index
    %c0_63 = arith.constant 0 : index
    %279 = vector.load %arg9[%c0_62, %c0_63] : memref<1x32xf32, #tpu.memory_space<vmem>>, vector<1x32xf32>
    %280 = vector.broadcast %279 : vector<1x32xf32> to vector<8x32xf32>
    %281 = arith.addf %278, %280 : vector<8x32xf32>
    %cst_64 = arith.constant 0.000000e+00 : f32
    %282 = vector.broadcast %cst_64 : f32 to vector<8x32xf32>
    %283 = arith.maximumf %281, %282 : vector<8x32xf32>
    %c0_65 = arith.constant 0 : index
    %c0_66 = arith.constant 0 : index
    %284 = vector.load %arg10[%c0_65, %c0_66] : memref<32x128xf32, #tpu.memory_space<vmem>>, vector<32x128xf32>
    %cst_67 = arith.constant dense<0.000000e+00> : vector<8x128xf32>
    %285 = tpu.matmul %283, %284, %cst_67 {dimension_numbers = #tpu.dot_dimension_numbers<[1], [0], [0], [1], [0, 0, 1, 1], [], []>} : vector<8x32xf32>, vector<32x128xf32>, vector<8x128xf32> -> vector<8x128xf32>
    %c0_68 = arith.constant 0 : index
    %c0_69 = arith.constant 0 : index
    %286 = vector.load %arg11[%c0_68, %c0_69] : memref<1x128xf32, #tpu.memory_space<vmem>>, vector<1x128xf32>
    %287 = vector.broadcast %286 : vector<1x128xf32> to vector<8x128xf32>
    %288 = arith.addf %285, %287 : vector<8x128xf32>
    %c0_70 = arith.constant 0 : index
    %c0_71 = arith.constant 0 : index
    %289 = vector.load %arg12[%c0_70, %c0_71] : memref<8x128xf32, #tpu.memory_space<vmem>>, vector<8x128xf32>
    tpu.vector_store %arg12[%c0_70, %c0_71], %288 {strides = array<i32>} : memref<8x128xf32, #tpu.memory_space<vmem>>, vector<8x128xf32>,
    return
  }
  func.func @transform_0(%arg0: i32) -> (i32, i32) {
    %c0_i32 = arith.constant 0 : i32
    %c0_i32_0 = arith.constant 0 : i32
    return %arg0, %c0_i32 : i32, i32
  }
  func.func @transform_1(%arg0: i32) -> (i32, i32) {
    %c0_i32 = arith.constant 0 : i32
    %c0_i32_0 = arith.constant 0 : i32
    return %arg0, %c0_i32 : i32, i32
  }
  func.func @transform_2(%arg0: i32) -> (i32, i32) {
    %c0_i32 = arith.constant 0 : i32
    %c0_i32_0 = arith.constant 0 : i32
    return %arg0, %c0_i32 : i32, i32
  }
  func.func @transform_3(%arg0: i32) -> (i32, i32) {
    %c0_i32 = arith.constant 0 : i32
    %c0_i32_0 = arith.constant 0 : i32
    %c0_i32_1 = arith.constant 0 : i32
    return %c0_i32, %c0_i32_0 : i32, i32
  }
  func.func @transform_4(%arg0: i32) -> (i32, i32) {
    %c0_i32 = arith.constant 0 : i32
    %c0_i32_0 = arith.constant 0 : i32
    %c0_i32_1 = arith.constant 0 : i32
    return %c0_i32, %c0_i32_0 : i32, i32
  }
  func.func @transform_5(%arg0: i32) -> (i32, i32) {
    %c0_i32 = arith.constant 0 : i32
    %c0_i32_0 = arith.constant 0 : i32
    %c0_i32_1 = arith.constant 0 : i32
    return %c0_i32, %c0_i32_0 : i32, i32
  }
  func.func @transform_6(%arg0: i32) -> (i32, i32) {
    %c0_i32 = arith.constant 0 : i32
    %c0_i32_0 = arith.constant 0 : i32
    %c0_i32_1 = arith.constant 0 : i32
    return %c0_i32, %c0_i32_0 : i32, i32
  }
  func.func @transform_7(%arg0: i32) -> (i32, i32) {
    %c0_i32 = arith.constant 0 : i32
    %c0_i32_0 = arith.constant 0 : i32
    %c0_i32_1 = arith.constant 0 : i32
    return %c0_i32, %c0_i32_0 : i32, i32
  }
  func.func @transform_8(%arg0: i32) -> (i32, i32) {
    %c0_i32 = arith.constant 0 : i32
    %c0_i32_0 = arith.constant 0 : i32
    %c0_i32_1 = arith.constant 0 : i32
    return %c0_i32, %c0_i32_0 : i32, i32
  }
  func.func @transform_9(%arg0: i32) -> (i32, i32) {
    %c0_i32 = arith.constant 0 : i32
    %c0_i32_0 = arith.constant 0 : i32
    %c0_i32_1 = arith.constant 0 : i32
    return %c0_i32, %c0_i32_0 : i32, i32
  }
  func.func @transform_10(%arg0: i32) -> (i32, i32) {
    %c0_i32 = arith.constant 0 : i32
    %c0_i32_0 = arith.constant 0 : i32
    %c0_i32_1 = arith.constant 0 : i32
    return %c0_i32, %c0_i32_0 : i32, i32
  }
  func.func @transform_11(%arg0: i32) -> (i32, i32) {
    %c0_i32 = arith.constant 0 : i32
    %c0_i32_0 = arith.constant 0 : i32
    return %arg0, %c0_i32 : i32, i32
  }
}

</mosaic_0001>

<llo_original>
// kernel: tpu_custom_call.1
$region0: #{tpu_custom_call.1}
  #allocation0 [shape = 'u32[]', space=smem, size = 0x4, offset = 0x4, fixed_abs, tag = 'smem constant byte address 0x4 - core index']
  #allocation1 [shape = 'u32[72,128]{1,0:T(1,128)}', space=vmem, size = 0x9000, scoped, tag = 'internal scratch']
  %s0 = inlined_call_operand.vmem [shape: s32[8,8], index: 0, kind: input, shape index: {}]
  %s1 = inlined_call_operand.hbm [shape: s32[8,8], index: 1, kind: input, shape index: {}]
  %s2 = inlined_call_operand.vmem [shape: s32[8,2], index: 2, kind: input, shape index: {}]
  %s3 = inlined_call_operand.vmem [shape: f32[64,32], index: 3, kind: input, shape index: {}]
  %s4 = inlined_call_operand.vmem [shape: f32[32,32], index: 4, kind: input, shape index: {}]
  %s5 = inlined_call_operand.vmem [shape: f32[32,32], index: 5, kind: input, shape index: {}]
  %s6 = inlined_call_operand.vmem [shape: f32[1,32], index: 6, kind: input, shape index: {}]
  %s7 = inlined_call_operand.vmem [shape: f32[32,32], index: 7, kind: input, shape index: {}]
  %s8 = inlined_call_operand.vmem [shape: f32[1,32], index: 8, kind: input, shape index: {}]
  %s9 = inlined_call_operand.hbm [shape: f32[32,128], index: 9, kind: input, shape index: {}]
  %s10 = inlined_call_operand.vmem [shape: f32[1,128], index: 10, kind: input, shape index: {}]
  %s11 = inlined_call_operand.hbm [shape: f32[8,128], index: 11, kind: output, shape index: {}]
  %s12 = sld [smem:[#allocation0]]
  $region62: #{tpu_custom_call.1} parent=0
    _
  %s14 = ssub.s32 1, %s12
  %s15 = scalar_select 0, %s14, %s12
  $region1: #{tpu_custom_call.1} parent=0
    #allocation2 [shape = 'u8[4096]{0}', space=vmem, size = 0x1000, scoped, tag = 'input window, operand 1, single buffered']
    #allocation3 [shape = 's32[1]{0}', space=sflag, size = 0x4, scoped, tag = 'scoped memory for tpu_custom_call.1']
    #allocation4 [shape = 's32[1]{0}', space=sflag, size = 0x4, scoped, tag = 'scoped memory for tpu_custom_call.1']
    #allocation5 [shape = 'u8[16384]{0}', space=vmem, size = 0x4000, scoped, tag = 'input window, operand 9, single buffered']
    #allocation6 [shape = 's32[1]{0}', space=sflag, size = 0x4, scoped, tag = 'scoped memory for tpu_custom_call.1']
    #allocation7 [shape = 'u8[4096]{0}', space=vmem, size = 0x1000, scoped, tag = 'output window, operand 0, single buffered']
    %16 = vsyncpa [#allocation3], 0
    %17 = vsyncpa [#allocation6], 0
    %18 = vsyncpa [#allocation4], 0
    // Predicated region
    $region2: #{tpu_custom_call.1} parent=1 // pred_check
      _
    $region3: #{tpu_custom_call.1} parent=1 // pred_check_branch
      %20 = sbr.rel (0) target = $region5
    $region4: #{tpu_custom_call.1} parent=1 // pred_region
      _
    $region5: #{tpu_custom_call.1} parent=1 // pred_fallthru
      _
    // Predicated region
    $region6: #{tpu_custom_call.1} parent=1 // pred_check
      _
    $region7: #{tpu_custom_call.1} parent=1 // pred_check_branch
      %22 = sbr.rel (0) target = $region9
    $region8: #{tpu_custom_call.1} parent=1 // pred_region
      %24 = vsyncadd [#allocation3], 0
      %s26 = sshll.u32 %s1, 4
      %s27 = int_to_ptr.hbm [resolvable:$true] %s26
      %s28 = sshll.u32 [#allocation2], 4
      %s29 = int_to_ptr.vmem [resolvable:$true] %s28
      %31 = dma.hbm_to_vmem [thread:$0]  %s27, 128, %s29, [#allocation3]
    $region9: #{tpu_custom_call.1} parent=1 // pred_fallthru
      _
    // Predicated region
    $region10: #{tpu_custom_call.1} parent=1 // pred_check
      _
    $region11: #{tpu_custom_call.1} parent=1 // pred_check_branch
      %33 = sbr.rel (0) target = $region13
    $region12: #{tpu_custom_call.1} parent=1 // pred_region
      _
    $region13: #{tpu_custom_call.1} parent=1 // pred_fallthru
      _
    // Predicated region
    $region14: #{tpu_custom_call.1} parent=1 // pred_check
      _
    $region15: #{tpu_custom_call.1} parent=1 // pred_check_branch
      %35 = sbr.rel (0) target = $region17
    $region16: #{tpu_custom_call.1} parent=1 // pred_region
      _
    $region17: #{tpu_custom_call.1} parent=1 // pred_fallthru
      _
    // Predicated region
    $region18: #{tpu_custom_call.1} parent=1 // pred_check
      _
    $region19: #{tpu_custom_call.1} parent=1 // pred_check_branch
      %37 = sbr.rel (0) target = $region21
    $region20: #{tpu_custom_call.1} parent=1 // pred_region
      _
    $region21: #{tpu_custom_call.1} parent=1 // pred_fallthru
      _
    // Predicated region
    $region22: #{tpu_custom_call.1} parent=1 // pred_check
      _
    $region23: #{tpu_custom_call.1} parent=1 // pred_check_branch
      %39 = sbr.rel (0) target = $region25
    $region24: #{tpu_custom_call.1} parent=1 // pred_region
      _
    $region25: #{tpu_custom_call.1} parent=1 // pred_fallthru
      _
    // Predicated region
    $region26: #{tpu_custom_call.1} parent=1 // pred_check
      _
    $region27: #{tpu_custom_call.1} parent=1 // pred_check_branch
      %41 = sbr.rel (0) target = $region29
    $region28: #{tpu_custom_call.1} parent=1 // pred_region
      _
    $region29: #{tpu_custom_call.1} parent=1 // pred_fallthru
      _
    // Predicated region
    $region30: #{tpu_custom_call.1} parent=1 // pred_check
      _
    $region31: #{tpu_custom_call.1} parent=1 // pred_check_branch
      %43 = sbr.rel (0) target = $region33
    $region32: #{tpu_custom_call.1} parent=1 // pred_region
      _
    $region33: #{tpu_custom_call.1} parent=1 // pred_fallthru
      _
    // Predicated region
    $region34: #{tpu_custom_call.1} parent=1 // pred_check
      _
    $region35: #{tpu_custom_call.1} parent=1 // pred_check_branch
      %45 = sbr.rel (0) target = $region37
    $region36: #{tpu_custom_call.1} parent=1 // pred_region
      _
    $region37: #{tpu_custom_call.1} parent=1 // pred_fallthru
      _
    // Predicated region
    $region38: #{tpu_custom_call.1} parent=1 // pred_check
      _
    $region39: #{tpu_custom_call.1} parent=1 // pred_check_branch
      %47 = sbr.rel (0) target = $region41
    $region40: #{tpu_custom_call.1} parent=1 // pred_region
      %49 = vsyncadd [#allocation6], 0
      %s50 = sshll.u32 %s9, 4
      %s51 = int_to_ptr.hbm [resolvable:$true] %s50
      %s52 = sshll.u32 [#allocation5], 4
      %s53 = int_to_ptr.vmem [resolvable:$true] %s52
      %58 = dma.hbm_to_vmem [thread:$0]  %s51, 512, %s53, [#allocation6], 128, 128, 8
    $region41: #{tpu_custom_call.1} parent=1 // pred_fallthru
      _
    // Predicated region
    $region42: #{tpu_custom_call.1} parent=1 // pred_check
      _
    $region43: #{tpu_custom_call.1} parent=1 // pred_check_branch
      %60 = sbr.rel (0) target = $region45
    $region44: #{tpu_custom_call.1} parent=1 // pred_region
      _
    $region45: #{tpu_custom_call.1} parent=1 // pred_fallthru
      _
    // Predicated region
    $region46: #{tpu_custom_call.1} parent=1 // pred_check
      _
    $region47: #{tpu_custom_call.1} parent=1 // pred_check_branch
      %62 = sbr.rel (0) target = $region49
    $region48: #{tpu_custom_call.1} parent=1 // pred_region
      %64 = dma.done [#allocation3], 128
    $region49: #{tpu_custom_call.1} parent=1 // pred_fallthru
      _
    // Predicated region
    $region50: #{tpu_custom_call.1} parent=1 // pred_check
      _
    $region51: #{tpu_custom_call.1} parent=1 // pred_check_branch
      %66 = sbr.rel (0) target = $region53
    $region52: #{tpu_custom_call.1} parent=1 // pred_region
      %68 = dma.done [#allocation6], 512
    $region53: #{tpu_custom_call.1} parent=1 // pred_fallthru
      _
    %v69 = vld [vmem:[%s0] sm:$0xff]
    %v70 = vld [vmem:[#allocation2] sm:$0xff]
    %v71 = vld [vmem:[%s2] sm:$0xff]
    %v72 = vlaneseq
    %v73 = vand.u32 %v72, 127
    %74 = vset.pattern.permute.xlu0 0
    %75 = vperm.xlu0 %74, %v69
    %v76 = vpop.permute.xlu0 %75
    %vm77 = vcmp.eq.s32.totalorder %v73, %v76
    %v78 = vsel %vm77, 1, 0
    %v79 = vcvt.s32.f32 %v78
    %80 = vset.pattern.permute.xlu0 0
    %81 = vperm.xlu0 %80, %v70
    %v82 = vpop.permute.xlu0 %81
    %vm83 = vcmp.eq.s32.totalorder %v73, %v82
    %v84 = vsel %vm83, 1, 0
    %v85 = vcvt.s32.f32 %v84
    %vm86 = vcmp.eq.s32.totalorder %v71, 0
    %v87 = vsel %vm86, 1, 0
    %v88 = vcvt.s32.f32 %v87
    %v89 = vmul.f32 %v88, 0.005
    %v90 = vadd.f32 %v89, 0.125
    %92 = vset.pattern.permute.xlu0 0
    %93 = vperm.xlu0 %92, %v90
    %v94 = vpop.permute.xlu0 %93
    %v96 = vmul.f32 %v94, %v79
    %v97 = vadd.f32 %v96, 0.0
    %98 = vset.pattern.permute.xlu0 1
    %99 = vperm.xlu0 %98, %v90
    %v100 = vpop.permute.xlu0 %99
    %v102 = vmul.f32 %v100, %v85
    %v103 = vadd.f32 %v102, 0.0
    %104 = vset.pattern.permute.xlu0 1
    %105 = vperm.xlu0 %104, %v69
    %v106 = vpop.permute.xlu0 %105
    %vm107 = vcmp.eq.s32.totalorder %v73, %v106
    %v108 = vsel %vm107, 1, 0
    %v109 = vcvt.s32.f32 %v108
    %110 = vset.pattern.permute.xlu0 1
    %111 = vperm.xlu0 %110, %v70
    %v112 = vpop.permute.xlu0 %111
    %vm113 = vcmp.eq.s32.totalorder %v73, %v112
    %v114 = vsel %vm113, 1, 0
    %v115 = vcvt.s32.f32 %v114
    %vm116 = vcmp.eq.s32.totalorder %v71, 1
    %v117 = vsel %vm116, 1, 0
    %v118 = vcvt.s32.f32 %v117
    %v119 = vmul.f32 %v118, 0.005
    %v120 = vadd.f32 %v119, 0.125
    %122 = vset.pattern.permute.xlu0 0
    %123 = vperm.xlu0 %122, %v120
    %v124 = vpop.permute.xlu0 %123
    %v126 = vmul.f32 %v124, %v109
    %v127 = vadd.f32 %v97, %v126
    %128 = vset.pattern.permute.xlu0 1
    %129 = vperm.xlu0 %128, %v120
    %v130 = vpop.permute.xlu0 %129
    %v132 = vmul.f32 %v130, %v115
    %v133 = vadd.f32 %v103, %v132
    %134 = vset.pattern.permute.xlu0 2
    %135 = vperm.xlu0 %134, %v69
    %v136 = vpop.permute.xlu0 %135
    %vm137 = vcmp.eq.s32.totalorder %v73, %v136
    %v138 = vsel %vm137, 1, 0
    %v139 = vcvt.s32.f32 %v138
    %140 = vset.pattern.permute.xlu0 2
    %141 = vperm.xlu0 %140, %v70
    %v142 = vpop.permute.xlu0 %141
    %vm143 = vcmp.eq.s32.totalorder %v73, %v142
    %v144 = vsel %vm143, 1, 0
    %v145 = vcvt.s32.f32 %v144
    %vm146 = vcmp.eq.s32.totalorder %v71, 2
    %v147 = vsel %vm146, 1, 0
    %v148 = vcvt.s32.f32 %v147
    %v149 = vmul.f32 %v148, 0.005
    %v150 = vadd.f32 %v149, 0.125
    %152 = vset.pattern.permute.xlu0 0
    %153 = vperm.xlu0 %152, %v150
    %v154 = vpop.permute.xlu0 %153
    %v156 = vmul.f32 %v154, %v139
    %v157 = vadd.f32 %v127, %v156
    %158 = vset.pattern.permute.xlu0 1
    %159 = vperm.xlu0 %158, %v150
    %v160 = vpop.permute.xlu0 %159
    %v162 = vmul.f32 %v160, %v145
    %v163 = vadd.f32 %v133, %v162
    %164 = vset.pattern.permute.xlu0 3
    %165 = vperm.xlu0 %164, %v69
    %v166 = vpop.permute.xlu0 %165
    %vm167 = vcmp.eq.s32.totalorder %v73, %v166
    %v168 = vsel %vm167, 1, 0
    %v169 = vcvt.s32.f32 %v168
    %170 = vset.pattern.permute.xlu0 3
    %171 = vperm.xlu0 %170, %v70
    %v172 = vpop.permute.xlu0 %171
    %vm173 = vcmp.eq.s32.totalorder %v73, %v172
    %v174 = vsel %vm173, 1, 0
    %v175 = vcvt.s32.f32 %v174
    %vm176 = vcmp.eq.s32.totalorder %v71, 3
    %v177 = vsel %vm176, 1, 0
    %v178 = vcvt.s32.f32 %v177
    %v179 = vmul.f32 %v178, 0.005
    %v180 = vadd.f32 %v179, 0.125
    %182 = vset.pattern.permute.xlu0 0
    %183 = vperm.xlu0 %182, %v180
    %v184 = vpop.permute.xlu0 %183
    %v186 = vmul.f32 %v184, %v169
    %v187 = vadd.f32 %v157, %v186
    %188 = vset.pattern.permute.xlu0 1
    %189 = vperm.xlu0 %188, %v180
    %v190 = vpop.permute.xlu0 %189
    %v192 = vmul.f32 %v190, %v175
    %v193 = vadd.f32 %v163, %v192
    %194 = vset.pattern.permute.xlu0 4
    %195 = vperm.xlu0 %194, %v69
    %v196 = vpop.permute.xlu0 %195
    %vm197 = vcmp.eq.s32.totalorder %v73, %v196
    %v198 = vsel %vm197, 1, 0
    %v199 = vcvt.s32.f32 %v198
    %200 = vset.pattern.permute.xlu0 4
    %201 = vperm.xlu0 %200, %v70
    %v202 = vpop.permute.xlu0 %201
    %vm203 = vcmp.eq.s32.totalorder %v73, %v202
    %v204 = vsel %vm203, 1, 0
    %v205 = vcvt.s32.f32 %v204
    %vm206 = vcmp.eq.s32.totalorder %v71, 4
    %v207 = vsel %vm206, 1, 0
    %v208 = vcvt.s32.f32 %v207
    %v209 = vmul.f32 %v208, 0.005
    %v210 = vadd.f32 %v209, 0.125
    %212 = vset.pattern.permute.xlu0 0
    %213 = vperm.xlu0 %212, %v210
    %v214 = vpop.permute.xlu0 %213
    %v216 = vmul.f32 %v214, %v199
    %v217 = vadd.f32 %v187, %v216
    %218 = vset.pattern.permute.xlu0 1
    %219 = vperm.xlu0 %218, %v210
    %v220 = vpop.permute.xlu0 %219
    %v222 = vmul.f32 %v220, %v205
    %v223 = vadd.f32 %v193, %v222
    %224 = vset.pattern.permute.xlu0 5
    %225 = vperm.xlu0 %224, %v69
    %v226 = vpop.permute.xlu0 %225
    %vm227 = vcmp.eq.s32.totalorder %v73, %v226
    %v228 = vsel %vm227, 1, 0
    %v229 = vcvt.s32.f32 %v228
    %230 = vset.pattern.permute.xlu0 5
    %231 = vperm.xlu0 %230, %v70
    %v232 = vpop.permute.xlu0 %231
    %vm233 = vcmp.eq.s32.totalorder %v73, %v232
    %v234 = vsel %vm233, 1, 0
    %v235 = vcvt.s32.f32 %v234
    %vm236 = vcmp.eq.s32.totalorder %v71, 5
    %v237 = vsel %vm236, 1, 0
    %v238 = vcvt.s32.f32 %v237
    %v239 = vmul.f32 %v238, 0.005
    %v240 = vadd.f32 %v239, 0.125
    %242 = vset.pattern.permute.xlu0 0
    %243 = vperm.xlu0 %242, %v240
    %v244 = vpop.permute.xlu0 %243
    %v246 = vmul.f32 %v244, %v229
    %v247 = vadd.f32 %v217, %v246
    %248 = vset.pattern.permute.xlu0 1
    %249 = vperm.xlu0 %248, %v240
    %v250 = vpop.permute.xlu0 %249
    %v252 = vmul.f32 %v250, %v235
    %v253 = vadd.f32 %v223, %v252
    %254 = vset.pattern.permute.xlu0 6
    %255 = vperm.xlu0 %254, %v69
    %v256 = vpop.permute.xlu0 %255
    %vm257 = vcmp.eq.s32.totalorder %v73, %v256
    %v258 = vsel %vm257, 1, 0
    %v259 = vcvt.s32.f32 %v258
    %260 = vset.pattern.permute.xlu0 6
    %261 = vperm.xlu0 %260, %v70
    %v262 = vpop.permute.xlu0 %261
    %vm263 = vcmp.eq.s32.totalorder %v73, %v262
    %v264 = vsel %vm263, 1, 0
    %v265 = vcvt.s32.f32 %v264
    %vm266 = vcmp.eq.s32.totalorder %v71, 6
    %v267 = vsel %vm266, 1, 0
    %v268 = vcvt.s32.f32 %v267
    %v269 = vmul.f32 %v268, 0.005
    %v270 = vadd.f32 %v269, 0.125
    %272 = vset.pattern.permute.xlu0 0
    %273 = vperm.xlu0 %272, %v270
    %v274 = vpop.permute.xlu0 %273
    %v276 = vmul.f32 %v274, %v259
    %v277 = vadd.f32 %v247, %v276
    %278 = vset.pattern.permute.xlu0 1
    %279 = vperm.xlu0 %278, %v270
    %v280 = vpop.permute.xlu0 %279
    %v282 = vmul.f32 %v280, %v265
    %v283 = vadd.f32 %v253, %v282
    %284 = vset.pattern.permute.xlu0 7
    %285 = vperm.xlu0 %284, %v69
    %v286 = vpop.permute.xlu0 %285
    %vm287 = vcmp.eq.s32.totalorder %v73, %v286
    %v288 = vsel %vm287, 1, 0
    %v289 = vcvt.s32.f32 %v288
    %290 = vset.pattern.permute.xlu0 7
    %291 = vperm.xlu0 %290, %v70
    %v292 = vpop.permute.xlu0 %291
    %vm293 = vcmp.eq.s32.totalorder %v73, %v292
    %v294 = vsel %vm293, 1, 0
    %v295 = vcvt.s32.f32 %v294
    %vm296 = vcmp.eq.s32.totalorder %v71, 7
    %v297 = vsel %vm296, 1, 0
    %v298 = vcvt.s32.f32 %v297
    %v299 = vmul.f32 %v298, 0.005
    %v300 = vadd.f32 %v299, 0.125
    %302 = vset.pattern.permute.xlu0 0
    %303 = vperm.xlu0 %302, %v300
    %v304 = vpop.permute.xlu0 %303
    %v306 = vmul.f32 %v304, %v289
    %v307 = vadd.f32 %v277, %v306
    %308 = vset.pattern.permute.xlu0 1
    %309 = vperm.xlu0 %308, %v300
    %v310 = vpop.permute.xlu0 %309
    %v312 = vmul.f32 %v310, %v295
    %v313 = vadd.f32 %v283, %v312
    %v314 = vld [vmem:[%s3] sm:$0xff]
    %v315 = vld [vmem:[%s3 + $0x8] sm:$0xff]
    %v316 = vld [vmem:[%s3 + $0x10] sm:$0xff]
    %v317 = vld [vmem:[%s3 + $0x18] sm:$0xff]
    %v318 = vld [vmem:[%s3 + $0x20] sm:$0xff]
    %v319 = vld [vmem:[%s3 + $0x28] sm:$0xff]
    %v320 = vld [vmem:[%s3 + $0x30] sm:$0xff]
    %v321 = vld [vmem:[%s3 + $0x38] sm:$0xff]
    %vm322 = vcmask 523264
    %v324 = vsel %vm322, %v307, 0
    %326 = vmatpush.msra.mxu0 0.0
    %327 = vmatpush.msra.mxu0 0.0
    %328 = vmatpush.msra.mxu0 0.0
    %329 = vmatpush.msra.mxu0 0.0
    %330 = vmatpush.msra.mxu0 0.0
    %331 = vmatpush.msra.mxu0 0.0
    %332 = vmatpush.msra.mxu0 0.0
    %333 = vmatpush.msra.mxu0 0.0
    %334 = vmatpush.msra.mxu0 %v321
    %335 = vmatpush.msra.mxu0 %v320
    %336 = vmatpush.msra.mxu0 %v319
    %337 = vmatpush.msra.mxu0 %v318
    %338 = vmatpush.msra.mxu0 %v317
    %339 = vmatpush.msra.mxu0 %v316
    %340 = vmatpush.msra.mxu0 %v315
    %341 = vmatpush.msra.mxu0 %v314
    %342 = vmatmul.f32.gmra.mxu0 %v324
    %v343 = vpop.f32.mrf.mxu0
    %v344 = vadd.f32 0.0, %v343
    %345 = vdwg.mxu0
    %v347 = vsel %vm322, %v313, 0
    %349 = vmatpush.msra.mxu0 0.0
    %350 = vmatpush.msra.mxu0 0.0
    %351 = vmatpush.msra.mxu0 0.0
    %352 = vmatpush.msra.mxu0 0.0
    %353 = vmatpush.msra.mxu0 0.0
    %354 = vmatpush.msra.mxu0 0.0
    %355 = vmatpush.msra.mxu0 0.0
    %356 = vmatpush.msra.mxu0 0.0
    %357 = vmatpush.msra.mxu0 %v321
    %358 = vmatpush.msra.mxu0 %v320
    %359 = vmatpush.msra.mxu0 %v319
    %360 = vmatpush.msra.mxu0 %v318
    %361 = vmatpush.msra.mxu0 %v317
    %362 = vmatpush.msra.mxu0 %v316
    %363 = vmatpush.msra.mxu0 %v315
    %364 = vmatpush.msra.mxu0 %v314
    %365 = vmatmul.f32.gmra.mxu0 %v347
    %v366 = vpop.f32.mrf.mxu0
    %v367 = vadd.f32 0.0, %v366
    %368 = vdwg.mxu0
    %v369 = vld [vmem:[%s4] sm:$0xff]
    %v370 = vld [vmem:[%s4 + $0x8] sm:$0xff]
    %v371 = vld [vmem:[%s4 + $0x10] sm:$0xff]
    %v372 = vld [vmem:[%s4 + $0x18] sm:$0xff]
    %v373 = vld [vmem:[%s5] sm:$0xff]
    %v374 = vld [vmem:[%s5 + $0x8] sm:$0xff]
    %v375 = vld [vmem:[%s5 + $0x10] sm:$0xff]
    %v376 = vld [vmem:[%s5 + $0x18] sm:$0xff]
    %vm377 = vcmask 261120
    %v379 = vsel %vm377, %v367, 0
    %381 = vmatpush.msra.mxu0 0.0
    %382 = vmatpush.msra.mxu0 0.0
    %383 = vmatpush.msra.mxu0 0.0
    %384 = vmatpush.msra.mxu0 0.0
    %385 = vmatpush.msra.mxu0 0.0
    %386 = vmatpush.msra.mxu0 0.0
    %387 = vmatpush.msra.mxu0 0.0
    %388 = vmatpush.msra.mxu0 0.0
    %389 = vmatpush.msra.mxu0 0.0
    %390 = vmatpush.msra.mxu0 0.0
    %391 = vmatpush.msra.mxu0 0.0
    %392 = vmatpush.msra.mxu0 0.0
    %393 = vmatpush.msra.mxu0 %v376
    %394 = vmatpush.msra.mxu0 %v375
    %395 = vmatpush.msra.mxu0 %v374
    %396 = vmatpush.msra.mxu0 %v373
    %397 = vmatmul.f32.gmra.mxu0 %v379
    %v398 = vpop.f32.mrf.mxu0
    %v399 = vadd.f32 0.0, %v398
    %400 = vdwg.mxu0
    %v402 = vsel %vm377, %v344, 0
    %404 = vmatpush.msra.mxu0 0.0
    %405 = vmatpush.msra.mxu0 0.0
    %406 = vmatpush.msra.mxu0 0.0
    %407 = vmatpush.msra.mxu0 0.0
    %408 = vmatpush.msra.mxu0 0.0
    %409 = vmatpush.msra.mxu0 0.0
    %410 = vmatpush.msra.mxu0 0.0
    %411 = vmatpush.msra.mxu0 0.0
    %412 = vmatpush.msra.mxu0 0.0
    %413 = vmatpush.msra.mxu0 0.0
    %414 = vmatpush.msra.mxu0 0.0
    %415 = vmatpush.msra.mxu0 0.0
    %416 = vmatpush.msra.mxu0 %v372
    %417 = vmatpush.msra.mxu0 %v371
    %418 = vmatpush.msra.mxu0 %v370
    %419 = vmatpush.msra.mxu0 %v369
    %420 = vmatmul.f32.gmra.mxu0 %v402
    %v421 = vpop.f32.mrf.mxu0
    %v422 = vadd.f32 %v399, %v421
    %423 = vdwg.mxu0
    %v424 = vld [vmem:[%s6] sm:$0x1]
    %v426 = vperm.slane %v424, 0
    %v428 = vadd.f32 %v422, %v426
    %v429 = vmax.f32 %v428, 0.0
    %v430 = vld [vmem:[%s7] sm:$0xff]
    %v431 = vld [vmem:[%s7 + $0x8] sm:$0xff]
    %v432 = vld [vmem:[%s7 + $0x10] sm:$0xff]
    %v433 = vld [vmem:[%s7 + $0x18] sm:$0xff]
    %v434 = vld [vmem:[%s8] sm:$0x1]
    %v436 = vperm.slane %v434, 0
    %v439 = vsel %vm377, %v429, 0
    %441 = vmatpush.msra.mxu0 0.0
    %442 = vmatpush.msra.mxu0 0.0
    %443 = vmatpush.msra.mxu0 0.0
    %444 = vmatpush.msra.mxu0 0.0
    %445 = vmatpush.msra.mxu0 0.0
    %446 = vmatpush.msra.mxu0 0.0
    %447 = vmatpush.msra.mxu0 0.0
    %448 = vmatpush.msra.mxu0 0.0
    %449 = vmatpush.msra.mxu0 0.0
    %450 = vmatpush.msra.mxu0 0.0
    %451 = vmatpush.msra.mxu0 0.0
    %452 = vmatpush.msra.mxu0 0.0
    %453 = vmatpush.msra.mxu0 %v433
    %454 = vmatpush.msra.mxu0 %v432
    %455 = vmatpush.msra.mxu0 %v431
    %456 = vmatpush.msra.mxu0 %v430
    %457 = vmatmul.f32.gmra.mxu0 %v439
    %v458 = vpop.f32.mrf.mxu0
    %v459 = vadd.f32 %v436, %v458
    %460 = vdwg.mxu0
    %v461 = vmax.f32 %v459, 0.0
    %v462 = vld [vmem:[#allocation5] sm:$0xff]
    %v463 = vld [vmem:[#allocation5 + $0x8] sm:$0xff]
    %v464 = vld [vmem:[#allocation5 + $0x10] sm:$0xff]
    %v465 = vld [vmem:[#allocation5 + $0x18] sm:$0xff]
    %v466 = vld [vmem:[%s10] sm:$0x1]
    %v468 = vperm.slane %v466, 0
    %v471 = vsel %vm377, %v461, 0
    %473 = vmatpush.msra.mxu0 0.0
    %474 = vmatpush.msra.mxu0 0.0
    %475 = vmatpush.msra.mxu0 0.0
    %476 = vmatpush.msra.mxu0 0.0
    %477 = vmatpush.msra.mxu0 0.0
    %478 = vmatpush.msra.mxu0 0.0
    %479 = vmatpush.msra.mxu0 0.0
    %480 = vmatpush.msra.mxu0 0.0
    %481 = vmatpush.msra.mxu0 0.0
    %482 = vmatpush.msra.mxu0 0.0
    %483 = vmatpush.msra.mxu0 0.0
    %484 = vmatpush.msra.mxu0 0.0
    %485 = vmatpush.msra.mxu0 %v465
    %486 = vmatpush.msra.mxu0 %v464
    %487 = vmatpush.msra.mxu0 %v463
    %488 = vmatpush.msra.mxu0 %v462
    %489 = vmatmul.f32.gmra.mxu0 %v471
    %v490 = vpop.f32.mrf.mxu0
    %v491 = vadd.f32 %v468, %v490
    %492 = vdwg.mxu0
    %493 = vst [vmem:[#allocation7] sm:$0xff] %v491
    // Predicated region
    $region54: #{tpu_custom_call.1} parent=1 // pred_check
      _
    $region55: #{tpu_custom_call.1} parent=1 // pred_check_branch
      %495 = sbr.rel (0) target = $region57
    $region56: #{tpu_custom_call.1} parent=1 // pred_region
      %497 = vsyncadd [#allocation4], 0
      %s499 = sshll.u32 [#allocation7], 4
      %s500 = int_to_ptr.vmem [resolvable:$true] %s499
      %s501 = sshll.u32 %s11, 4
      %s502 = int_to_ptr.hbm [resolvable:$true] %s501
      %504 = dma.vmem_to_hbm [thread:$0]  %s500, 128, %s502, [#allocation4]
    $region57: #{tpu_custom_call.1} parent=1 // pred_fallthru
      _
    // Predicated region
    $region58: #{tpu_custom_call.1} parent=1 // pred_check
      _
    $region59: #{tpu_custom_call.1} parent=1 // pred_check_branch
      %506 = sbr.rel (0) target = $region61
    $region60: #{tpu_custom_call.1} parent=1 // pred_region
      %508 = dma.done [#allocation4], 128
    $region61: #{tpu_custom_call.1} parent=1 // pred_fallthru
      _
    %509 = vsyncpa [#allocation3], 1
    %510 = vsyncpa [#allocation6], 1
    %511 = vsyncpa [#allocation4], 1

</llo_original>
